<compile_context>
chip_gen: v6e
topology: v6e:2x2x1
jax: 0.10.0
libtpu: 0.0.40
codegen_flags: <defaults>
</compile_context>

<pallas_src>
import functools

import jax
import jax.numpy as jnp
from jax import lax
from jax.experimental import pallas as pl
from jax.experimental.pallas import tpu as pltpu


def _round_up(x, m):
    return ((x + m - 1) // m) * m


def logreg_kernel(x_ref, w_ref, b_ref, o_ref, acc_ref):
    # x_ref: (TM, TK) VMEM   w_ref: (1, TK) VMEM   b_ref: (1,) SMEM
    # o_ref: (1, TM) VMEM    acc_ref: (1, TM) f32 VMEM scratch
    k = pl.program_id(1)

    @pl.when(k == 0)
    def _init():
        acc_ref[...] = jnp.zeros_like(acc_ref)

    # (1, TK) . (TM, TK) contracting last dims -> (1, TM): lane-dense partial sums,
    # no in-kernel transpose of w, exact f32 accumulation.
    acc_ref[...] += lax.dot_general(
        w_ref[...], x_ref[...],
        dimension_numbers=(((1,), (1,)), ((), ())),
        preferred_element_type=jnp.float32,
    )

    @pl.when(k == pl.num_programs(1) - 1)
    def _finalize():
        logits = acc_ref[...] + b_ref[0]            # scalar bias read from SMEM
        o_ref[...] = (1.0 / (1.0 + jnp.exp(-logits))).astype(o_ref.dtype)


@functools.partial(jax.jit, static_argnames=("tm", "tk"))
def logreg_forward(x, w, b, *, tm=512, tk=2048):
    """x: (N, V) f32, w: (1, V) f32 (nn.Linear.weight layout), b: (1,) f32 -> (N, 1) f32."""
    N, V = x.shape
    x = x.astype(jnp.float32)
    w = w.astype(jnp.float32)

    # Adapt tile sizes to small problems while keeping (8, 128)-legal blocks.
    tm_eff = min(tm, _round_up(N, 8))
    tk_eff = min(tk, _round_up(V, 128))
    n_pad = _round_up(N, tm_eff)
    v_pad = _round_up(V, tk_eff)

    if n_pad != N or v_pad != V:
        x = jnp.pad(x, ((0, n_pad - N), (0, v_pad - V)))
    if v_pad != V:
        w = jnp.pad(w, ((0, 0), (0, v_pad - V)))
    b_smem = b.reshape(1).astype(jnp.float32)

    grid = (n_pad // tm_eff, v_pad // tk_eff)

    out = pl.pallas_call(
        logreg_kernel,
        out_shape=jax.ShapeDtypeStruct((1, n_pad), jnp.float32),
        grid_spec=pltpu.PrefetchScalarGridSpec(
            num_scalar_prefetch=0,
            grid=grid,
            in_specs=[
                pl.BlockSpec((tm_eff, tk_eff), lambda i, k: (i, k)),       # x tile
                pl.BlockSpec((1, tk_eff), lambda i, k: (0, k)),            # w tile (constant in i)
                pl.BlockSpec(memory_space=pltpu.MemorySpace.SMEM),         # bias scalar in SMEM
            ],
            out_specs=pl.BlockSpec((1, tm_eff), lambda i, k: (0, i)),      # lane-dense output slab
            scratch_shapes=[pltpu.VMEM((1, tm_eff), jnp.float32)],         # f32 accumulator
        ),
        compiler_params=pltpu.CompilerParams(
            dimension_semantics=("parallel", "arbitrary"),
        ),
    )(x, w, b_smem)

    # (1, N_pad) lane-dense slab -> (N, 1), matching nn.Linear(V, 1) + Sigmoid output.
    return out[0, :N].reshape(N, 1)


if __name__ == "__main__":
    key = jax.random.PRNGKey(0)
    kx, kw, kb, kx2 = jax.random.split(key, 4)

    # --- Small-shape check (matches the module's natural sizes) ---
    vocab_size = 128
    batch = 8
    bound = 1.0 / jnp.sqrt(jnp.float32(vocab_size))
    w = jax.random.uniform(kw, (1, vocab_size), jnp.float32, -bound, bound)
    b = jax.random.uniform(kb, (1,), jnp.float32, -bound, bound)
    x = jax.random.normal(kx, (batch, vocab_size), jnp.float32)

    out = logreg_forward(x, w, b)
    jax.block_until_ready(out)

    ref = jax.nn.sigmoid(x @ w.T + b)
    assert out.shape == (batch, 1)
    assert jnp.allclose(out, ref, atol=1e-5, rtol=1e-5)

    # --- Tiled-path check: exercises multi-tile batch, K-tiling and padding ---
    vocab2, batch2 = 4500, 1100
    bound2 = 1.0 / jnp.sqrt(jnp.float32(vocab2))
    kw2, kb2 = jax.random.split(kb, 2)
    w2 = jax.random.uniform(kw2, (1, vocab2), jnp.float32, -bound2, bound2)
    b2 = jax.random.uniform(kb2, (1,), jnp.float32, -bound2, bound2)
    x2 = jax.random.normal(kx2, (batch2, vocab2), jnp.float32)

    out2 = logreg_forward(x2, w2, b2)
    jax.block_until_ready(out2)

    ref2 = jax.nn.sigmoid(x2 @ w2.T + b2)
    assert out2.shape == (batch2, 1)
    assert jnp.allclose(out2, ref2, atol=1e-5, rtol=1e-5)

    print("KERNEL_OK")
</pallas_src>

<mosaic_0001>
module attributes {stable_mosaic.version = 11 : i64} {
  func.func @logreg_kernel(%arg0: i32, %arg1: i32, %arg2: memref<8x128xf32, #tpu.memory_space<vmem>>, %arg3: memref<1x128xf32, #tpu.memory_space<vmem>>, %arg4: memref<1xf32, #tpu.memory_space<smem>>, %arg5: memref<1x8xf32, #tpu.memory_space<vmem>>, %arg6: memref<1x8xf32, #tpu.memory_space<vmem>>) attributes {dimension_semantics = [#tpu.dimension_semantics<parallel>, #tpu.dimension_semantics<arbitrary>], iteration_bounds = array<i64: 1, 1>, scalar_prefetch = 0 : i64, scratch_operands = 1 : i64, tpu.core_type = #tpu.core_type<tc>, window_params = [{transform_indices = @transform_0, window_bounds = array<i64: 8, 128>}, {transform_indices = @transform_1, window_bounds = array<i64: 1, 128>}, {transform_indices = @transform_2, window_bounds = array<i64: 1>}, {transform_indices = @transform_3, window_bounds = array<i64: 1, 8>}]} {
    %c0_i32 = arith.constant 0 : i32
    %0 = arith.cmpi eq, %arg1, %c0_i32 : i32
    %1 = arith.extui %0 : i1 to i32
    %c0_i32_0 = arith.constant 0 : i32
    %2 = arith.cmpi ne, %1, %c0_i32_0 : i32
    scf.if %2 {
      %cst_10 = arith.constant 0.000000e+00 : f32
      %12 = vector.broadcast %cst_10 : f32 to vector<1x8xf32>
      %c0_11 = arith.constant 0 : index
      %c0_12 = arith.constant 0 : index
      %13 = vector.load %arg6[%c0_11, %c0_12] : memref<1x8xf32, #tpu.memory_space<vmem>>, vector<1x8xf32>
      tpu.vector_store %arg6[%c0_11, %c0_12], %12 {strides = array<i32>} : memref<1x8xf32, #tpu.memory_space<vmem>>, vector<1x8xf32>,
    } else {
    }
    %c0 = arith.constant 0 : index
    %c0_1 = arith.constant 0 : index
    %3 = vector.load %arg6[%c0, %c0_1] : memref<1x8xf32, #tpu.memory_space<vmem>>, vector<1x8xf32>
    %c0_2 = arith.constant 0 : index
    %c0_3 = arith.constant 0 : index
    %4 = vector.load %arg3[%c0_2, %c0_3] : memref<1x128xf32, #tpu.memory_space<vmem>>, vector<1x128xf32>
    %c0_4 = arith.constant 0 : index
    %c0_5 = arith.constant 0 : index
    %5 = vector.load %arg2[%c0_4, %c0_5] : memref<8x128xf32, #tpu.memory_space<vmem>>, vector<8x128xf32>
    %cst = arith.constant dense<0.000000e+00> : vector<1x8xf32>
    %6 = tpu.matmul %4, %5, %cst {dimension_numbers = #tpu.dot_dimension_numbers<[1], [1], [0], [0], [0, 0, 1, 0], [], []>} : vector<1x128xf32>, vector<8x128xf32>, vector<1x8xf32> -> vector<1x8xf32>
    %7 = arith.addf %3, %6 : vector<1x8xf32>
    %c0_6 = arith.constant 0 : index
    %c0_7 = arith.constant 0 : index
    %8 = vector.load %arg6[%c0_6, %c0_7] : memref<1x8xf32, #tpu.memory_space<vmem>>, vector<1x8xf32>
    tpu.vector_store %arg6[%c0_6, %c0_7], %7 {strides = array<i32>} : memref<1x8xf32, #tpu.memory_space<vmem>>, vector<1x8xf32>,
    %c0_i32_8 = arith.constant 0 : i32
    %9 = arith.cmpi eq, %arg1, %c0_i32_8 : i32
    %10 = arith.extui %9 : i1 to i32
    %c0_i32_9 = arith.constant 0 : i32
    %11 = arith.cmpi ne, %10, %c0_i32_9 : i32
    scf.if %11 {
      %c0_10 = arith.constant 0 : index
      %c0_11 = arith.constant 0 : index
      %12 = vector.load %arg6[%c0_10, %c0_11] : memref<1x8xf32, #tpu.memory_space<vmem>>, vector<1x8xf32>
      %c0_12 = arith.constant 0 : index
      %13 = memref.load %arg4[%c0_12] : memref<1xf32, #tpu.memory_space<smem>>
      %14 = vector.broadcast %13 : f32 to vector<1x8xf32>
      %15 = arith.addf %12, %14 : vector<1x8xf32>
      %cst_13 = arith.constant 0.000000e+00 : f32
      %16 = vector.broadcast %cst_13 : f32 to vector<1x8xf32>
      %17 = arith.subf %16, %15 : vector<1x8xf32>
      %18 = math.exp %17 : vector<1x8xf32>
      %cst_14 = arith.constant 1.000000e+00 : f32
      %19 = vector.broadcast %cst_14 : f32 to vector<1x8xf32>
      %20 = arith.addf %19, %18 : vector<1x8xf32>
      %cst_15 = arith.constant 1.000000e+00 : f32
      %21 = vector.broadcast %cst_15 : f32 to vector<1x8xf32>
      %22 = arith.divf %21, %20 : vector<1x8xf32>
      %c0_16 = arith.constant 0 : index
      %c0_17 = arith.constant 0 : index
      %23 = vector.load %arg5[%c0_16, %c0_17] : memref<1x8xf32, #tpu.memory_space<vmem>>, vector<1x8xf32>
      tpu.vector_store %arg5[%c0_16, %c0_17], %22 {strides = array<i32>} : memref<1x8xf32, #tpu.memory_space<vmem>>, vector<1x8xf32>,
    } else {
    }
    return
  }
  func.func @transform_0(%arg0: i32, %arg1: i32) -> (i32, i32) {
    %c0_i32 = arith.constant 0 : i32
    return %arg0, %arg1 : i32, i32
  }
  func.func @transform_1(%arg0: i32, %arg1: i32) -> (i32, i32) {
    %c0_i32 = arith.constant 0 : i32
    %c0_i32_0 = arith.constant 0 : i32
    return %c0_i32, %arg1 : i32, i32
  }
  func.func @transform_2(%arg0: i32, %arg1: i32) -> i32 {
    %c0_i32 = arith.constant 0 : i32
    %c0_i32_0 = arith.constant 0 : i32
    return %c0_i32 : i32
  }
  func.func @transform_3(%arg0: i32, %arg1: i32) -> (i32, i32) {
    %c0_i32 = arith.constant 0 : i32
    %c0_i32_0 = arith.constant 0 : i32
    return %c0_i32, %arg0 : i32, i32
  }
}

</mosaic_0001>

<llo_original>
// kernel: logreg_forward.1
$region0: #{logreg_forward.1}
  #allocation0 [shape = 'u32[]', space=smem, size = 0x4, offset = 0x4, fixed_abs, tag = 'smem constant byte address 0x4 - core index']
  #allocation1 [shape = 'u32[144,128]{1,0:T(1,128)}', space=vmem, size = 0x12000, scoped, tag = 'internal scratch']
  #allocation2 [shape = 'f32[1,8]{1,0:T(1,128)}', space=vmem, size = 0x200, scoped, tag = 'scratch operand']
  #allocation3 [shape = 'f32[1]{0:T(128)S(6)}', space=smem, size = 0x200, scoped, tag = 'scoped memory for logreg_forward.1']
  %s0 = inlined_call_operand.hbm [shape: f32[8,128], index: 0, kind: input, shape index: {}]
  %s1 = inlined_call_operand.vmem [shape: f32[1,128], index: 1, kind: input, shape index: {}]
  %s2 = inlined_call_operand.<no memory space> [shape: f32[1], index: 2, kind: input, shape index: {}]
  %s3 = inlined_call_operand.hbm [shape: f32[1,8], index: 3, kind: output, shape index: {}]
  %s4 = sld [smem:[#allocation0]]
  $region34: #{logreg_forward.1} parent=0
    _
  %s6 = ssub.s32 1, %s4
  %s7 = scalar_select 0, %s6, %s4
  %8 = sst [smem:[#allocation3]] %s2
  $region1: #{logreg_forward.1} parent=0
    #allocation4 [shape = 'u8[4096]{0}', space=vmem, size = 0x1000, scoped, tag = 'input window, operand 0, single buffered']
    #allocation5 [shape = 's32[1]{0}', space=sflag, size = 0x4, scoped, tag = 'scoped memory for logreg_forward.1']
    #allocation6 [shape = 's32[1]{0}', space=sflag, size = 0x4, scoped, tag = 'scoped memory for logreg_forward.1']
    #allocation7 [shape = 'u8[512]{0}', space=vmem, size = 0x400, scoped, tag = 'output window, operand 0, single buffered']
    %9 = vsyncpa [#allocation5], 0
    %10 = vsyncpa [#allocation6], 0
    // Predicated region
    $region2: #{logreg_forward.1} parent=1 // pred_check
      _
    $region3: #{logreg_forward.1} parent=1 // pred_check_branch
      %12 = sbr.rel (0) target = $region5
    $region4: #{logreg_forward.1} parent=1 // pred_region
      %s14 = ssub.s32 128, 128
      %15 = vsyncadd [#allocation5], %s14
      %s17 = sshll.u32 [#allocation4], 4
      %s18 = int_to_ptr.vmem [resolvable:$true] %s17
      %20 = dma.hbm_to_vmem [thread:$0]  %s0, 128, %s18, [#allocation5]
    $region5: #{logreg_forward.1} parent=1 // pred_fallthru
      _
    // Predicated region
    $region6: #{logreg_forward.1} parent=1 // pred_check
      _
    $region7: #{logreg_forward.1} parent=1 // pred_check_branch
      %22 = sbr.rel (0) target = $region9
    $region8: #{logreg_forward.1} parent=1 // pred_region
      _
    $region9: #{logreg_forward.1} parent=1 // pred_fallthru
      _
    // Predicated region
    $region10: #{logreg_forward.1} parent=1 // pred_check
      _
    $region11: #{logreg_forward.1} parent=1 // pred_check_branch
      %24 = sbr.rel (0) target = $region13
    $region12: #{logreg_forward.1} parent=1 // pred_region
      _
    $region13: #{logreg_forward.1} parent=1 // pred_fallthru
      _
    // Predicated region
    $region14: #{logreg_forward.1} parent=1 // pred_check
      _
    $region15: #{logreg_forward.1} parent=1 // pred_check_branch
      %26 = sbr.rel (0) target = $region17
    $region16: #{logreg_forward.1} parent=1 // pred_region
      %27 = dma.done [#allocation5], 128
    $region17: #{logreg_forward.1} parent=1 // pred_fallthru
      _
    %p28 = scmp.eq.s32.totalorder 0, 0
    // Predicated region
    $region18: #{logreg_forward.1} parent=1 // pred_check
      %p29 = pneg %p28
    $region19: #{logreg_forward.1} parent=1 // pred_check_branch
      %31 = sbr.rel (%p29) target = $region21
    $region20: #{logreg_forward.1} parent=1 // pred_region
      %vm32 = vcmask 57344
      %33 = vst.msk [vmem:[#allocation2] sm:$0x1] %vm32, 0.0
    $region21: #{logreg_forward.1} parent=1 // pred_fallthru
      _
    %v34 = vld [vmem:[#allocation2] sm:$0x1]
    %v35 = vld [vmem:[%s1] sm:$0x1]
    %v36 = vld [vmem:[#allocation4] sm:$0xff]
    %37 = vmatprep.subr.mxu0 0.0
    %38 = vmatpush1.xpose.msra.mxu0 0.0
    %39 = vmatprep.subr.mxu0 0.0
    %40 = vmatpush1.xpose.msra.mxu0 0.0
    %41 = vmatprep.subr.mxu0 0.0
    %42 = vmatpush1.xpose.msra.mxu0 0.0
    %43 = vmatprep.subr.mxu0 0.0
    %44 = vmatpush1.xpose.msra.mxu0 0.0
    %45 = vmatprep.subr.mxu0 0.0
    %46 = vmatpush1.xpose.msra.mxu0 0.0
    %47 = vmatprep.subr.mxu0 0.0
    %48 = vmatpush1.xpose.msra.mxu0 0.0
    %49 = vmatprep.subr.mxu0 0.0
    %50 = vmatpush1.xpose.msra.mxu0 0.0
    %51 = vmatprep.subr.mxu0 0.0
    %52 = vmatpush1.xpose.msra.mxu0 0.0
    %53 = vmatprep.subr.mxu0 0.0
    %54 = vmatpush1.xpose.msra.mxu0 0.0
    %55 = vmatprep.subr.mxu0 0.0
    %56 = vmatpush1.xpose.msra.mxu0 0.0
    %57 = vmatprep.subr.mxu0 0.0
    %58 = vmatpush1.xpose.msra.mxu0 0.0
    %59 = vmatprep.subr.mxu0 0.0
    %60 = vmatpush1.xpose.msra.mxu0 0.0
    %61 = vmatprep.subr.mxu0 0.0
    %62 = vmatpush1.xpose.msra.mxu0 0.0
    %63 = vmatprep.subr.mxu0 0.0
    %64 = vmatpush1.xpose.msra.mxu0 0.0
    %65 = vmatprep.subr.mxu0 0.0
    %66 = vmatpush1.xpose.msra.mxu0 0.0
    %67 = vmatprep.subr.mxu0 0.0
    %68 = vmatpush1.xpose.msra.mxu0 %v36
    %69 = vmatprep.subr.mxu0 0.0
    %70 = vmatpush2.xpose.msra.mxu0 0.0
    %71 = vmatprep.subr.mxu0 0.0
    %72 = vmatpush2.xpose.msra.mxu0 0.0
    %73 = vmatprep.subr.mxu0 0.0
    %74 = vmatpush2.xpose.msra.mxu0 0.0
    %75 = vmatprep.subr.mxu0 0.0
    %76 = vmatpush2.xpose.msra.mxu0 0.0
    %77 = vmatprep.subr.mxu0 0.0
    %78 = vmatpush2.xpose.msra.mxu0 0.0
    %79 = vmatprep.subr.mxu0 0.0
    %80 = vmatpush2.xpose.msra.mxu0 0.0
    %81 = vmatprep.subr.mxu0 0.0
    %82 = vmatpush2.xpose.msra.mxu0 0.0
    %83 = vmatprep.subr.mxu0 0.0
    %84 = vmatpush2.xpose.msra.mxu0 0.0
    %85 = vmatprep.subr.mxu0 0.0
    %86 = vmatpush2.xpose.msra.mxu0 0.0
    %87 = vmatprep.subr.mxu0 0.0
    %88 = vmatpush2.xpose.msra.mxu0 0.0
    %89 = vmatprep.subr.mxu0 0.0
    %90 = vmatpush2.xpose.msra.mxu0 0.0
    %91 = vmatprep.subr.mxu0 0.0
    %92 = vmatpush2.xpose.msra.mxu0 0.0
    %93 = vmatprep.subr.mxu0 0.0
    %94 = vmatpush2.xpose.msra.mxu0 0.0
    %95 = vmatprep.subr.mxu0 0.0
    %96 = vmatpush2.xpose.msra.mxu0 0.0
    %97 = vmatprep.subr.mxu0 0.0
    %98 = vmatpush2.xpose.msra.mxu0 0.0
    %99 = vmatprep.subr.mxu0 0.0
    %100 = vmatpush2.xpose.msra.mxu0 0.0
    %101 = vmatprep.mubr.f32.mxu0 0.0
    %102 = vmatmul.mubr.f32.gmra.mxu0 %v35
    %v103 = vpop.f32.mrf.mxu0
    %v104 = vadd.f32 0.0, %v103
    %v105 = vpop.f32.mrf.mxu0
    %106 = vdwg.mxu0
    %v107 = vadd.f32 %v34, %v104
    %vm108 = vcmask 57344
    %109 = vst.msk [vmem:[#allocation2] sm:$0x1] %vm108, %v107
    // Predicated region
    $region22: #{logreg_forward.1} parent=1 // pred_check
      %p110 = pneg %p28
    $region23: #{logreg_forward.1} parent=1 // pred_check_branch
      %112 = sbr.rel (%p110) target = $region25
    $region24: #{logreg_forward.1} parent=1 // pred_region
      %v113 = vld [vmem:[#allocation2] sm:$0x1]
      %s114 = sld [smem:[#allocation3]]
      %v115 = vstv %s114
      %v116 = vadd.f32 %v113, %v115
      %v117 = vsub.f32 0.0, %v116
      %v118 = vmul.f32 %v117, 1.442695
      %v119 = vpow.pop %v118
      %v120 = vadd.f32 %v119, 1.0
      %v121 = vrcp.pop %v120
      %v122 = vmul.f32 1.0, %v121
      %123 = vst.msk [vmem:[#allocation7] sm:$0x1] %vm108, %v122
    $region25: #{logreg_forward.1} parent=1 // pred_fallthru
      _
    // Predicated region
    $region26: #{logreg_forward.1} parent=1 // pred_check
      _
    $region27: #{logreg_forward.1} parent=1 // pred_check_branch
      %125 = sbr.rel (0) target = $region29
    $region28: #{logreg_forward.1} parent=1 // pred_region
      %s127 = ssub.s32 16, 16
      %128 = vsyncadd [#allocation6], %s127
      %s130 = sshll.u32 [#allocation7], 4
      %s131 = int_to_ptr.vmem [resolvable:$true] %s130
      %133 = dma.vmem_to_hbm [thread:$0]  %s131, 16, %s3, [#allocation6]
    $region29: #{logreg_forward.1} parent=1 // pred_fallthru
      _
    // Predicated region
    $region30: #{logreg_forward.1} parent=1 // pred_check
      _
    $region31: #{logreg_forward.1} parent=1 // pred_check_branch
      %135 = sbr.rel (0) target = $region33
    $region32: #{logreg_forward.1} parent=1 // pred_region
      %136 = dma.done [#allocation6], 16
    $region33: #{logreg_forward.1} parent=1 // pred_fallthru
      _
    %137 = vsyncpa [#allocation5], 1
    %138 = vsyncpa [#allocation6], 1

</llo_original>
